<compile_context>
chip_gen: v6e
topology: v6e:2x2x1
jax: 0.10.0
libtpu: 0.0.40
codegen_flags: <defaults>
</compile_context>

<pallas_src>
import functools

import jax
import jax.numpy as jnp
import numpy as np
from jax import lax
from jax.experimental import pallas as pl
from jax.experimental.pallas import tpu as pltpu

_HIGHEST = lax.Precision.HIGHEST


def _vmem_limit(block_bytes):
    """Explicit VMEM budget: 2x double-buffering + scratch headroom, capped so it
    is valid on every generation (v5e/v6e 128 MiB, v7x 64 MiB physical)."""
    return int(min(max(4 * block_bytes, 16 * 1024 * 1024), 64 * 1024 * 1024))


# --------------------------------------------------------------------------
# Conv1d(k=3, s=2, p=1) kernel: one fused tap dot per tile
# --------------------------------------------------------------------------
def _conv1d_k3s2_kernel(a_ref, w_ref, b_ref, o_ref, *, precision):
    # o[co, l] = b[co] + sum_{ci,tap} w[co, tap*C_in+ci] * a[tap*C_in+ci, l]
    acc = jnp.dot(w_ref[...], a_ref[0],
                  precision=precision, preferred_element_type=jnp.float32)
    o_ref[0] = (acc + b_ref[...]).astype(o_ref.dtype)


def conv1d_stride2_pallas(x, w, b, *, tile_l=1024, precision=_HIGHEST):
    """Conv1d(kernel=3, stride=2, padding=1) on NCL input -> NCL output."""
    N, C_in, L = x.shape
    C_out = w.shape[0]
    L_out = (L - 1) // 2 + 1

    # Single fused activation stream: the three stride-2 tap phases of the
    # padded input, concatenated along the channel axis (one XLA fusion pass,
    # one DMA stream per grid step instead of three).
    xp = jnp.pad(x, ((0, 0), (0, 0), (1, 1)))
    a = jnp.concatenate(
        [xp[:, :, 0:2 * L_out:2],          # x[:, :, 2l-1]
         xp[:, :, 1:2 * L_out + 1:2],      # x[:, :, 2l]
         xp[:, :, 2:2 * L_out + 2:2]],     # x[:, :, 2l+1]
        axis=1)                            # (N, 3*C_in, L_out)

    # Matching fused weight (C_out, 3*C_in) and bias column.
    w_fused = jnp.concatenate([w[:, :, 0], w[:, :, 1], w[:, :, 2]], axis=1)
    b_col = b.reshape(C_out, 1)

    # tile_l is a multiple of 128 (lane-dense stores); when L_out is smaller
    # we use the full length (block dim == array dim satisfies the (8,128)
    # rule).  No padding / trailing slice: Pallas masks the partial last block.
    T = tile_l if L_out > tile_l else L_out
    grid = (N, int(pl.cdiv(L_out, T)))

    blk_bytes = 4 * (3 * C_in * T + C_out * T + C_out * 3 * C_in + C_out)

    kernel = functools.partial(_conv1d_k3s2_kernel, precision=precision)
    out = pl.pallas_call(
        kernel,
        out_shape=jax.ShapeDtypeStruct((N, C_out, L_out), x.dtype),
        grid=grid,
        in_specs=[
            pl.BlockSpec((1, 3 * C_in, T), lambda n, j: (n, 0, j)),
            pl.BlockSpec((C_out, 3 * C_in), lambda n, j: (0, 0)),   # resident
            pl.BlockSpec((C_out, 1), lambda n, j: (0, 0)),          # resident
        ],
        out_specs=pl.BlockSpec((1, C_out, T), lambda n, j: (n, 0, j)),
        compiler_params=pltpu.CompilerParams(
            dimension_semantics=("parallel", "parallel"),
            vmem_limit_bytes=_vmem_limit(blk_bytes)),
    )(a, w_fused, b_col)
    return out


# --------------------------------------------------------------------------
# AvgPool2d(2, 2) over the last two dims of an (N, C, L) tensor
# --------------------------------------------------------------------------
def _avgpool2x2_kernel(x_ref, s_ref, o_ref, *, precision, valid_cols, block_cols):
    # Channel-pair pooling on the VPU (sublane add), length-pair pooling as a
    # single MXU dot against S (0/0.25 entries, scale folded in).
    xs = x_ref[0, :, 0, :] + x_ref[0, :, 1, :]            # (C2, 2T)
    if valid_cols % block_cols != 0:
        # Partial last tile: the S-dot contracts over the length axis, so the
        # out-of-bounds garbage must be zeroed (NaN/Inf * 0 would poison rows).
        col = (pl.program_id(1) * block_cols
               + lax.broadcasted_iota(jnp.int32, xs.shape, 1))
        xs = jnp.where(col < valid_cols, xs, 0.0)
    o_ref[0] = jnp.dot(xs, s_ref[...],
                       precision=precision,
                       preferred_element_type=jnp.float32).astype(o_ref.dtype)


def avgpool2d_pallas(x, *, tile_l=256, precision=_HIGHEST):
    """nn.AvgPool2d(2, 2) on a 3-D (N, C, L) tensor -> (N, C//2, L//2)."""
    N, C, L = x.shape
    C2, L2 = C // 2, L // 2                      # PyTorch floors odd sizes
    x = x[:, :2 * C2, :2 * L2]                   # identity when already even
    xr = x.reshape(N, C2, 2, 2 * L2)             # free row-major view

    T = tile_l if L2 > tile_l else L2
    grid = (N, int(pl.cdiv(L2, T)))

    # Length-pooling matrix with the 1/4 average folded in (exact powers of 2).
    s = 0.25 * (jnp.arange(2 * T)[:, None] // 2
                == jnp.arange(T)[None, :]).astype(x.dtype)   # (2T, T)

    # x block counts the sublane padding of the size-2 dim (2 -> 8).
    blk_bytes = 4 * (C2 * 8 * 2 * T + 2 * T * T + C2 * T)

    kernel = functools.partial(_avgpool2x2_kernel, precision=precision,
                               valid_cols=2 * L2, block_cols=2 * T)
    out = pl.pallas_call(
        kernel,
        out_shape=jax.ShapeDtypeStruct((N, C2, L2), x.dtype),
        grid=grid,
        in_specs=[
            pl.BlockSpec((1, C2, 2, 2 * T), lambda n, j: (n, 0, 0, j)),
            pl.BlockSpec((2 * T, T), lambda n, j: (0, 0)),           # resident
        ],
        out_specs=pl.BlockSpec((1, C2, T), lambda n, j: (n, 0, j)),
        compiler_params=pltpu.CompilerParams(
            dimension_semantics=("parallel", "parallel"),
            vmem_limit_bytes=_vmem_limit(blk_bytes)),
    )(xr, s)
    return out


# --------------------------------------------------------------------------
# Module wrapper
# --------------------------------------------------------------------------
class Downsample:
    """Pallas/TPU port of the PyTorch Downsample module (forward only)."""

    def __init__(self, in_ch: int, out_ch: int, use_conv: bool, key):
        self.in_ch = in_ch
        self.out_ch = out_ch
        self.use_conv = use_conv
        if use_conv:
            # Deterministic synthetic params, PyTorch-default-style uniform init.
            kw, kb = jax.random.split(key)
            fan_in = in_ch * 3
            bound = 1.0 / np.sqrt(fan_in)
            self.weight = jax.random.uniform(
                kw, (out_ch, in_ch, 3), jnp.float32, -bound, bound)
            self.bias = jax.random.uniform(
                kb, (out_ch,), jnp.float32, -bound, bound)
        else:
            self.weight = None
            self.bias = None

    def __call__(self, x):
        assert x.shape[1] == self.in_ch, (
            f"x and downsampling layer({self.in_ch}->{self.out_ch}) doesn't match.")
        if self.use_conv:
            return conv1d_stride2_pallas(x, self.weight, self.bias)
        return avgpool2d_pallas(x)


# --------------------------------------------------------------------------
# Self-test
# --------------------------------------------------------------------------
if __name__ == "__main__":
    key = jax.random.PRNGKey(0)
    k_x, k_params, k_x2, k_params2 = jax.random.split(key, 4)

    def conv_ref(x, w, b):
        return lax.conv_general_dilated(
            x, w, window_strides=(2,), padding=((1, 1),),
            dimension_numbers=("NCH", "OIH", "NCH"),
            precision=_HIGHEST) + b[None, :, None]

    # --- use_conv=True path: small UNet-ish shape ---
    N, C_in, C_out, L = 2, 4, 8, 16
    x = jax.random.normal(k_x, (N, C_in, L), jnp.float32)
    ds_conv = Downsample(C_in, C_out, use_conv=True, key=k_params)
    y_conv = ds_conv(x)
    jax.block_until_ready(y_conv)
    assert y_conv.shape == (N, C_out, L // 2), y_conv.shape
    np.testing.assert_allclose(
        np.asarray(y_conv),
        np.asarray(conv_ref(x, ds_conv.weight, ds_conv.bias)),
        rtol=1e-5, atol=1e-5)

    # Larger, non-divisible output length (single-tile path through the class).
    N2, C_in2, C_out2, L2_ = 2, 8, 16, 1030
    x2 = jax.random.normal(k_x2, (N2, C_in2, L2_), jnp.float32)
    ds_conv2 = Downsample(C_in2, C_out2, use_conv=True, key=k_params2)
    y_conv2 = ds_conv2(x2)
    jax.block_until_ready(y_conv2)
    np.testing.assert_allclose(
        np.asarray(y_conv2),
        np.asarray(conv_ref(x2, ds_conv2.weight, ds_conv2.bias)),
        rtol=1e-5, atol=1e-5)

    # Same shape with a small tile: exercises multi-tile grid + masked partial
    # last output block (515 = 2*256 + 3).
    y_conv3 = conv1d_stride2_pallas(x2, ds_conv2.weight, ds_conv2.bias, tile_l=256)
    jax.block_until_ready(y_conv3)
    np.testing.assert_allclose(
        np.asarray(y_conv3),
        np.asarray(conv_ref(x2, ds_conv2.weight, ds_conv2.bias)),
        rtol=1e-5, atol=1e-5)

    # --- use_conv=False path: AvgPool2d(2,2) over the (C, L) dims ---
    ds_pool = Downsample(C_in, C_in, use_conv=False, key=k_params)
    y_pool = ds_pool(x)
    jax.block_until_ready(y_pool)
    assert y_pool.shape == (N, C_in // 2, L // 2), y_pool.shape
    y_pool_ref = x.reshape(N, C_in // 2, 2, L // 2, 2).mean(axis=(2, 4))
    np.testing.assert_allclose(np.asarray(y_pool), np.asarray(y_pool_ref),
                               rtol=1e-5, atol=1e-5)

    # Multi-tile pool with a partial (masked) last tile: L2 = 515 = 2*256 + 3.
    x_pool_big = jax.random.normal(k_x2, (2, 8, 1030), jnp.float32)
    y_pool_big = avgpool2d_pallas(x_pool_big)
    jax.block_until_ready(y_pool_big)
    y_pool_big_ref = x_pool_big.reshape(2, 4, 2, 515, 2).mean(axis=(2, 4))
    np.testing.assert_allclose(np.asarray(y_pool_big),
                               np.asarray(y_pool_big_ref),
                               rtol=1e-5, atol=1e-5)

    # Odd channel/length sizes are floored, matching PyTorch AvgPool2d.
    x_odd = jax.random.normal(k_x, (N, 5, 17), jnp.float32)
    ds_pool_odd = Downsample(5, 5, use_conv=False, key=k_params)
    y_odd = ds_pool_odd(x_odd)
    jax.block_until_ready(y_odd)
    y_odd_ref = x_odd[:, :4, :16].reshape(N, 2, 2, 8, 2).mean(axis=(2, 4))
    np.testing.assert_allclose(np.asarray(y_odd), np.asarray(y_odd_ref),
                               rtol=1e-5, atol=1e-5)

    print("KERNEL_OK")
</pallas_src>

<mosaic_0001>
module attributes {stable_mosaic.version = 11 : i64} {
  func.func @_conv1d_k3s2_kernel(%arg0: i32, %arg1: i32, %arg2: memref<1x12x8xf32, #tpu.memory_space<vmem>>, %arg3: memref<8x12xf32, #tpu.memory_space<vmem>>, %arg4: memref<8x1xf32, #tpu.memory_space<vmem>>, %arg5: memref<1x8x8xf32, #tpu.memory_space<vmem>>) attributes {dimension_semantics = [#tpu.dimension_semantics<parallel>, #tpu.dimension_semantics<parallel>], iteration_bounds = array<i64: 2, 1>, scalar_prefetch = 0 : i64, scratch_operands = 0 : i64, tpu.core_type = #tpu.core_type<tc>, window_params = [{transform_indices = @transform_0, window_bounds = array<i64: 1, 12, 8>}, {pipeline_mode = #tpu.pipeline_mode<synchronous>, transform_indices = @transform_1, window_bounds = array<i64: 8, 12>}, {pipeline_mode = #tpu.pipeline_mode<synchronous>, transform_indices = @transform_2, window_bounds = array<i64: 8, 1>}, {transform_indices = @transform_3, window_bounds = array<i64: 1, 8, 8>}]} {
    %c0 = arith.constant 0 : index
    %c0_0 = arith.constant 0 : index
    %0 = vector.load %arg3[%c0, %c0_0] : memref<8x12xf32, #tpu.memory_space<vmem>>, vector<8x12xf32>
    %c0_1 = arith.constant 0 : index
    %c0_2 = arith.constant 0 : index
    %c0_3 = arith.constant 0 : index
    %1 = vector.load %arg2[%c0_1, %c0_2, %c0_3] : memref<1x12x8xf32, #tpu.memory_space<vmem>>, vector<1x12x8xf32>
    %2 = vector.shape_cast %1 : vector<1x12x8xf32> to vector<12x8xf32>
    %cst = arith.constant dense<0.000000e+00> : vector<8x8xf32>
    %3 = tpu.matmul %0, %2, %cst {dimension_numbers = #tpu.dot_dimension_numbers<[1], [0], [0], [1], [0, 0, 1, 1], [], []>, precision = #tpu.contract_precision<fp32>} : vector<8x12xf32>, vector<12x8xf32>, vector<8x8xf32> -> vector<8x8xf32>
    %c0_4 = arith.constant 0 : index
    %c0_5 = arith.constant 0 : index
    %4 = vector.load %arg4[%c0_4, %c0_5] : memref<8x1xf32, #tpu.memory_space<vmem>>, vector<8x1xf32>
    %5 = vector.broadcast %4 : vector<8x1xf32> to vector<8x8xf32>
    %6 = arith.addf %3, %5 : vector<8x8xf32>
    %c0_6 = arith.constant 0 : index
    %c0_7 = arith.constant 0 : index
    %c0_8 = arith.constant 0 : index
    %7 = vector.load %arg5[%c0_6, %c0_7, %c0_8] : memref<1x8x8xf32, #tpu.memory_space<vmem>>, vector<1x8x8xf32>
    %8 = vector.shape_cast %7 : vector<1x8x8xf32> to vector<8x8xf32>
    %9 = vector.shape_cast %6 : vector<8x8xf32> to vector<1x8x8xf32>
    tpu.vector_store %arg5[%c0_6, %c0_7, %c0_8], %9 {strides = array<i32>} : memref<1x8x8xf32, #tpu.memory_space<vmem>>, vector<1x8x8xf32>,
    return
  }
  func.func @transform_0(%arg0: i32, %arg1: i32) -> (i32, i32, i32) {
    %c0_i32 = arith.constant 0 : i32
    %c0_i32_0 = arith.constant 0 : i32
    return %arg0, %c0_i32, %arg1 : i32, i32, i32
  }
  func.func @transform_1(%arg0: i32, %arg1: i32) -> (i32, i32) {
    %c0_i32 = arith.constant 0 : i32
    %c0_i32_0 = arith.constant 0 : i32
    %c0_i32_1 = arith.constant 0 : i32
    return %c0_i32, %c0_i32_0 : i32, i32
  }
  func.func @transform_2(%arg0: i32, %arg1: i32) -> (i32, i32) {
    %c0_i32 = arith.constant 0 : i32
    %c0_i32_0 = arith.constant 0 : i32
    %c0_i32_1 = arith.constant 0 : i32
    return %c0_i32, %c0_i32_0 : i32, i32
  }
  func.func @transform_3(%arg0: i32, %arg1: i32) -> (i32, i32, i32) {
    %c0_i32 = arith.constant 0 : i32
    %c0_i32_0 = arith.constant 0 : i32
    return %arg0, %c0_i32, %arg1 : i32, i32, i32
  }
}

</mosaic_0001>

<llo_original>
// kernel: tpu_custom_call.1
$region0: #{tpu_custom_call.1}
  #allocation0 [shape = 'u32[]', space=smem, size = 0x4, offset = 0x4, fixed_abs, tag = 'smem constant byte address 0x4 - core index']
  #allocation1 [shape = 'u32[144,128]{1,0:T(1,128)}', space=vmem, size = 0x12000, scoped, tag = 'internal scratch']
  %s0 = inlined_call_operand.vmem [shape: f32[2,12,8], index: 0, kind: input, shape index: {}]
  %s1 = inlined_call_operand.vmem [shape: f32[8,12], index: 1, kind: input, shape index: {}]
  %s2 = inlined_call_operand.vmem [shape: f32[8,1], index: 2, kind: input, shape index: {}]
  %s3 = inlined_call_operand.hbm [shape: f32[2,8,8], index: 3, kind: output, shape index: {}]
  %s4 = sld [smem:[#allocation0]]
  $region45: #{tpu_custom_call.1} parent=0
    _
  %s6 = ssub.s32 1, %s4
  %s7 = scalar_select 0, %s6, %s4
  $region1: #{tpu_custom_call.1} parent=0
    #allocation2 [shape = 'u8[8192]{0}', space=vmem, size = 0x2000, scoped, tag = 'output window, operand 0']
    #allocation3 [shape = 's32[2]{0}', space=sflag, size = 0x8, scoped, tag = 'scoped memory for tpu_custom_call.1']
    %8 = vsyncpa [#allocation3], 0
    %s9 = scalar_lea.sflag [#allocation3], 1
    %10 = vsyncpa %s9, 0
    loop: start=0, step=1, limit=4
    $region2: #{tpu_custom_call.1} parent=1 // loop_pre_header
      _
    $region3: #{tpu_custom_call.1} parent=1 // loop_header
      %s12 = sphi 0, %s16
      %p13 = scmp.ge.s32.totalorder %s12, 4
      %s19 = sphi 0, %s31
      %s20 = sphi 0, %s27
      %s21 = sphi 0, %s19
      %s22 = sphi 0, %s20
      %s23 = sphi 0, %s21
      %s24 = sphi 0, %s22
      %s36 = sphi 0, %s38
      %s39 = sphi 0, %s36
      %s40 = sphi 0, %s39
      %s56 = sphi 0, %s40
      %s60 = sphi 0, %s60
      %s62 = sphi 0, %s60
      %s63 = sphi 0, %s62
      %s77 = sphi 0, %s63
      %s81 = sphi 0, %s81
      %s83 = sphi 0, %s81
      %s84 = sphi 0, %s83
      %s98 = sphi 0, %s84
      %s106 = sphi 0, %s108
      %s109 = sphi 0, %s106
      %s110 = sphi 0, %s109
      %s126 = sphi 0, %s110
    $region4: #{tpu_custom_call.1} parent=1 // loop_header_branch
      %15 = sbr.rel (%p13) target = $region8
    $region5: #{tpu_custom_call.1} parent=1 // loop_body
      %s17 = ssub.s32 %s12, 1
      %s18 = ssub.s32 %s12, 2
      %s25 = sadd.s32 1, %s20
      %p26 = scmp.ge.s32.totalorder %s25, 1
      %s27 = scalar_select %p26, 0, %s25
      %s28 = sadd.s32 1, %s19
      %s29 = scalar_select %p26, %s28, %s19
      %p30 = scmp.ge.s32.totalorder %s29, 2
      %s31 = scalar_select %p30, 0, %s29
      %s32 = ssub.s32 %s19, %s31
      %s33 = ssub.s32 %s20, %s27
      %s34 = sor.u32 %s32, %s33
      %p35 = scmp.eq.s32.totalorder %s34, 0
      %s37 = sadd.s32 %s36, 1
      %s38 = scalar_select %p35, %s36, %s37
      %p41 = pneg %p35
      %p42 = scmp.eq.s32.totalorder %s12, 1
      %p43 = por %p41, %p42
      %p44 = scmp.ne.s32.totalorder %s36, %s39
      %p45 = scmp.eq.s32.totalorder %s12, 0
      %p46 = por %p44, %p45
      %p47 = scmp.ne.s32.totalorder %s36, %s39
      %p48 = scmp.eq.s32.totalorder %s17, 1
      %p49 = por %p47, %p48
      %p50 = scmp.ne.s32.totalorder %s39, %s40
      %p51 = scmp.eq.s32.totalorder %s17, 0
      %p52 = por %p50, %p51
      %p53 = scmp.ne.s32.totalorder %s39, %s40
      %p54 = scmp.eq.s32.totalorder %s18, 1
      %p55 = por %p53, %p54
      %p57 = scmp.ne.s32.totalorder %s40, %s56
      %p58 = scmp.eq.s32.totalorder %s18, 0
      %p59 = por %p57, %p58
      %s61 = sadd.s32 %s60, 1
      %p64 = scmp.eq.s32.totalorder %s12, 1
      %p65 = scmp.ne.s32.totalorder %s60, %s62
      %p66 = scmp.eq.s32.totalorder %s12, 0
      %p67 = por %p65, %p66
      %p68 = scmp.ne.s32.totalorder %s60, %s62
      %p69 = scmp.eq.s32.totalorder %s17, 1
      %p70 = por %p68, %p69
      %p71 = scmp.ne.s32.totalorder %s62, %s63
      %p72 = scmp.eq.s32.totalorder %s17, 0
      %p73 = por %p71, %p72
      %p74 = scmp.ne.s32.totalorder %s62, %s63
      %p75 = scmp.eq.s32.totalorder %s18, 1
      %p76 = por %p74, %p75
      %p78 = scmp.ne.s32.totalorder %s63, %s77
      %p79 = scmp.eq.s32.totalorder %s18, 0
      %p80 = por %p78, %p79
      %s82 = sadd.s32 %s81, 1
      %p85 = scmp.eq.s32.totalorder %s12, 1
      %p86 = scmp.ne.s32.totalorder %s81, %s83
      %p87 = scmp.eq.s32.totalorder %s12, 0
      %p88 = por %p86, %p87
      %p89 = scmp.ne.s32.totalorder %s81, %s83
      %p90 = scmp.eq.s32.totalorder %s17, 1
      %p91 = por %p89, %p90
      %p92 = scmp.ne.s32.totalorder %s83, %s84
      %p93 = scmp.eq.s32.totalorder %s17, 0
      %p94 = por %p92, %p93
      %p95 = scmp.ne.s32.totalorder %s83, %s84
      %p96 = scmp.eq.s32.totalorder %s18, 1
      %p97 = por %p95, %p96
      %p99 = scmp.ne.s32.totalorder %s84, %s98
      %p100 = scmp.eq.s32.totalorder %s18, 0
      %p101 = por %p99, %p100
      %s102 = ssub.s32 %s19, %s31
      %s103 = ssub.s32 %s20, %s27
      %s104 = sor.u32 %s102, %s103
      %p105 = scmp.eq.s32.totalorder %s104, 0
      %s107 = sadd.s32 %s106, 1
      %s108 = scalar_select %p105, %s106, %s107
      %p111 = pneg %p105
      %p112 = scmp.eq.s32.totalorder %s12, 1
      %p113 = por %p111, %p112
      %p114 = scmp.ne.s32.totalorder %s106, %s109
      %p115 = scmp.eq.s32.totalorder %s12, 0
      %p116 = por %p114, %p115
      %p117 = scmp.ne.s32.totalorder %s106, %s109
      %p118 = scmp.eq.s32.totalorder %s17, 1
      %p119 = por %p117, %p118
      %p120 = scmp.ne.s32.totalorder %s109, %s110
      %p121 = scmp.eq.s32.totalorder %s17, 0
      %p122 = por %p120, %p121
      %p123 = scmp.ne.s32.totalorder %s109, %s110
      %p124 = scmp.eq.s32.totalorder %s18, 1
      %p125 = por %p123, %p124
      %p127 = scmp.ne.s32.totalorder %s110, %s126
      %p128 = scmp.eq.s32.totalorder %s18, 0
      %p129 = por %p127, %p128
      %p130 = scmp.le.s32.totalorder 1, %s12
      %p131 = scmp.lt.s32.totalorder %s12, 3
      %p132 = pnand %p130, %p131
      %p133 = pneg %p132
      // Predicated region
      $region9: #{tpu_custom_call.1} parent=5 // pred_check
        _
      $region10: #{tpu_custom_call.1} parent=5 // pred_check_branch
        %135 = sbr.rel (%p132) target = $region12
      $region11: #{tpu_custom_call.1} parent=5 // pred_region
        %s136 = ssub.s32 %s12, 1
        // Predicated region
        $region13: #{tpu_custom_call.1} parent=11 // pred_check
          %p137 = pneg %p73
        $region14: #{tpu_custom_call.1} parent=11 // pred_check_branch
          %139 = sbr.rel (%p137) target = $region16
        $region15: #{tpu_custom_call.1} parent=11 // pred_region
          _
        $region16: #{tpu_custom_call.1} parent=11 // pred_fallthru
          _
        // Predicated region
        $region17: #{tpu_custom_call.1} parent=11 // pred_check
          %p140 = pneg %p94
        $region18: #{tpu_custom_call.1} parent=11 // pred_check_branch
          %142 = sbr.rel (%p140) target = $region20
        $region19: #{tpu_custom_call.1} parent=11 // pred_region
          _
        $region20: #{tpu_custom_call.1} parent=11 // pred_fallthru
          _
      $region12: #{tpu_custom_call.1} parent=5 // pred_fallthru
        _
      %p143 = scmp.lt.s32.totalorder %s12, 2
      // Predicated region
      $region21: #{tpu_custom_call.1} parent=5 // pred_check
        %p144 = pneg %p143
      $region22: #{tpu_custom_call.1} parent=5 // pred_check_branch
        %146 = sbr.rel (%p144) target = $region24
      $region23: #{tpu_custom_call.1} parent=5 // pred_region
        // Predicated region
        $region25: #{tpu_custom_call.1} parent=23 // pred_check
          %p147 = pneg %p46
        $region26: #{tpu_custom_call.1} parent=23 // pred_check_branch
          %149 = sbr.rel (%p147) target = $region28
        $region27: #{tpu_custom_call.1} parent=23 // pred_region
          %p150 = scmp.lt.s32.totalorder %s19, 1
          %s151 = scalar_select %p150, %s19, 1
          %p152 = scmp.lt.s32.totalorder %s20, 0
          %s153 = scalar_select %p152, %s20, 0
          %s154 = smul.addr %s151, 2
          %s155 = sadd.s32 %s153, %s154
          %s156 = smul.addr %s155, 8
          %s157 = scalar_lea.vmem %s0, %s156
        $region28: #{tpu_custom_call.1} parent=23 // pred_fallthru
          _
      $region24: #{tpu_custom_call.1} parent=5 // pred_fallthru
        _
      %p158 = scmp.le.s32.totalorder 1, %s12
      %p159 = scmp.lt.s32.totalorder %s12, 3
      %p160 = pnand %p158, %p159
      %p161 = pneg %p160
      // Predicated region
      $region29: #{tpu_custom_call.1} parent=5 // pred_check
        _
      $region30: #{tpu_custom_call.1} parent=5 // pred_check_branch
        %163 = sbr.rel (%p160) target = $region32
      $region31: #{tpu_custom_call.1} parent=5 // pred_region
        %s164 = ssub.s32 %s12, 1
        %p165 = scmp.lt.s32.totalorder %s21, 1
        %s166 = scalar_select %p165, %s21, 1
        %p167 = scmp.lt.s32.totalorder %s22, 0
        %s168 = scalar_select %p167, %s22, 0
        %s169 = smul.addr %s166, 2
        %s170 = sadd.s32 %s168, %s169
        %s171 = smul.addr %s170, 8
        %s172 = scalar_lea.vmem %s0, %s171
        %p173 = pneg %p52
        %p174 = pneg %p49
        %p175 = pneg %p73
        %p176 = pneg %p70
        %p177 = pneg %p94
        %p178 = pneg %p91
        %p179 = pneg %p122
        %p180 = pneg %p119
        %s181 = sand.u32 %s109, 1
        %s182 = scalar_lea.sflag [#allocation3], %s181
        %s183 = sand.u32 %s109, 1
        %s184 = smul.addr %s183, 8
        %s185 = scalar_lea.vmem [#allocation2], %s184
        %p186 = scmp.lt.s32.totalorder %s21, 1
        %s187 = scalar_select %p186, %s21, 1
        %p188 = scmp.lt.s32.totalorder %s22, 0
        %s189 = scalar_select %p188, %s22, 0
        %s190 = smul.addr %s187, 2
        %s191 = sadd.s32 %s189, %s190
        %s192 = smul.addr %s191, 8
        %s193 = scalar_lea.vmem %s0, %s192
        %v194 = vld [vmem:[%s1] sm:$0xff]
        %v195 = vld [vmem:[%s193] sm:$0xff]
        %v196 = vld [vmem:[%s193 + $0x8] sm:$0xf]
        %v197 = vld [vmem:[%s2] sm:$0xff]
        %199 = vset.pattern.permute.xlu0 0
        %200 = vperm.xlu0 %199, %v197
        %v201 = vpop.permute.xlu0 %200
        %vm203 = vcmask 97280
        %v205 = vsel %vm203, %v194, 0
        %vm207 = vcmask 1043456
        %v209 = vsel %vm207, %v196, 0
        %211 = vmatprep.subr.mxu0 0.0
        %212 = vmatpush1.msra.mxu0 0.0
        %213 = vmatprep.subr.mxu0 0.0
        %214 = vmatpush1.msra.mxu0 0.0
        %215 = vmatprep.subr.mxu0 0.0
        %216 = vmatpush1.msra.mxu0 0.0
        %217 = vmatprep.subr.mxu0 0.0
        %218 = vmatpush1.msra.mxu0 0.0
        %219 = vmatprep.subr.mxu0 0.0
        %220 = vmatpush1.msra.mxu0 0.0
        %221 = vmatprep.subr.mxu0 0.0
        %222 = vmatpush1.msra.mxu0 0.0
        %223 = vmatprep.subr.mxu0 0.0
        %224 = vmatpush1.msra.mxu0 0.0
        %225 = vmatprep.subr.mxu0 0.0
        %226 = vmatpush1.msra.mxu0 0.0
        %227 = vmatprep.subr.mxu0 0.0
        %228 = vmatpush1.msra.mxu0 0.0
        %229 = vmatprep.subr.mxu0 0.0
        %230 = vmatpush1.msra.mxu0 0.0
        %231 = vmatprep.subr.mxu0 0.0
        %232 = vmatpush1.msra.mxu0 0.0
        %233 = vmatprep.subr.mxu0 0.0
        %234 = vmatpush1.msra.mxu0 0.0
        %235 = vmatprep.subr.mxu0 0.0
        %236 = vmatpush1.msra.mxu0 0.0
        %237 = vmatprep.subr.mxu0 0.0
        %238 = vmatpush1.msra.mxu0 0.0
        %239 = vmatprep.subr.mxu0 0.0
        %v240 = vand.u32 %v209, 4294901760
        %241 = vmatpush1.msra.mxu0 %v240
        %242 = vmatprep.subr.mxu0 0.0
        %v243 = vand.u32 %v195, 4294901760
        %244 = vmatpush1.msra.mxu0 %v243
        %245 = vmatprep.subr.mxu0 0.0
        %246 = vmatpush2.msra.mxu0 0.0
        %247 = vmatprep.subr.mxu0 0.0
        %248 = vmatpush2.msra.mxu0 0.0
        %249 = vmatprep.subr.mxu0 0.0
        %250 = vmatpush2.msra.mxu0 0.0
        %251 = vmatprep.subr.mxu0 0.0
        %252 = vmatpush2.msra.mxu0 0.0
        %253 = vmatprep.subr.mxu0 0.0
        %254 = vmatpush2.msra.mxu0 0.0
        %255 = vmatprep.subr.mxu0 0.0
        %256 = vmatpush2.msra.mxu0 0.0
        %257 = vmatprep.subr.mxu0 0.0
        %258 = vmatpush2.msra.mxu0 0.0
        %259 = vmatprep.subr.mxu0 0.0
        %260 = vmatpush2.msra.mxu0 0.0
        %261 = vmatprep.subr.mxu0 0.0
        %262 = vmatpush2.msra.mxu0 0.0
        %263 = vmatprep.subr.mxu0 0.0
        %264 = vmatpush2.msra.mxu0 0.0
        %265 = vmatprep.subr.mxu0 0.0
        %266 = vmatpush2.msra.mxu0 0.0
        %267 = vmatprep.subr.mxu0 0.0
        %268 = vmatpush2.msra.mxu0 0.0
        %269 = vmatprep.subr.mxu0 0.0
        %270 = vmatpush2.msra.mxu0 0.0
        %271 = vmatprep.subr.mxu0 0.0
        %272 = vmatpush2.msra.mxu0 0.0
        %273 = vmatprep.subr.mxu0 0.0
        %274 = vmatpush2.msra.mxu0 0.0
        %275 = vmatprep.subr.mxu0 0.0
        %276 = vmatpush2.msra.mxu0 0.0
        %277 = vmatprep.mubr.f32.mxu0 0.0
        %v278 = vand.u32 %v205, 4294901760
        %v279 = vsub.f32 %v205, %v278
        %v280 = vand.u32 %v279, 4294901760
        %v281 = vsub.f32 %v279, %v280
        %v282 = vand.u32 %v281, 4294901760
        %283 = vmatmul.mubr.f32.gmra.mxu0 %v282
        %v284 = vpop.f32.mrf.mxu0
        %v285 = vadd.f32 %v201, %v284
        %v286 = vpop.f32.mrf.mxu0
        %287 = vdwg.mxu0
        %288 = vmatprep.subr.mxu0 0.0
        %289 = vmatpush1.msra.mxu0 0.0
        %290 = vmatprep.subr.mxu0 0.0
        %291 = vmatpush1.msra.mxu0 0.0
        %292 = vmatprep.subr.mxu0 0.0
        %293 = vmatpush1.msra.mxu0 0.0
        %294 = vmatprep.subr.mxu0 0.0
        %295 = vmatpush1.msra.mxu0 0.0
        %296 = vmatprep.subr.mxu0 0.0
        %297 = vmatpush1.msra.mxu0 0.0
        %298 = vmatprep.subr.mxu0 0.0
        %299 = vmatpush1.msra.mxu0 0.0
        %300 = vmatprep.subr.mxu0 0.0
        %301 = vmatpush1.msra.mxu0 0.0
        %302 = vmatprep.subr.mxu0 0.0
        %303 = vmatpush1.msra.mxu0 0.0
        %304 = vmatprep.subr.mxu0 0.0
        %305 = vmatpush1.msra.mxu0 0.0
        %306 = vmatprep.subr.mxu0 0.0
        %307 = vmatpush1.msra.mxu0 0.0
        %308 = vmatprep.subr.mxu0 0.0
        %309 = vmatpush1.msra.mxu0 0.0
        %310 = vmatprep.subr.mxu0 0.0
        %311 = vmatpush1.msra.mxu0 0.0
        %312 = vmatprep.subr.mxu0 0.0
        %313 = vmatpush1.msra.mxu0 0.0
        %314 = vmatprep.subr.mxu0 0.0
        %315 = vmatpush1.msra.mxu0 0.0
        %316 = vmatprep.subr.mxu0 0.0
        %v317 = vand.u32 %v209, 4294901760
        %v318 = vsub.f32 %v209, %v317
        %v319 = vand.u32 %v318, 4294901760
        %v320 = vsub.f32 %v318, %v319
        %v321 = vand.u32 %v320, 4294901760
        %322 = vmatpush1.msra.mxu0 %v321
        %323 = vmatprep.subr.mxu0 0.0
        %v324 = vand.u32 %v195, 4294901760
        %v325 = vsub.f32 %v195, %v324
        %v326 = vand.u32 %v325, 4294901760
        %v327 = vsub.f32 %v325, %v326
        %v328 = vand.u32 %v327, 4294901760
        %329 = vmatpush1.msra.mxu0 %v328
        %330 = vmatprep.subr.mxu0 0.0
        %331 = vmatpush2.msra.mxu0 0.0
        %332 = vmatprep.subr.mxu0 0.0
        %333 = vmatpush2.msra.mxu0 0.0
        %334 = vmatprep.subr.mxu0 0.0
        %335 = vmatpush2.msra.mxu0 0.0
        %336 = vmatprep.subr.mxu0 0.0
        %337 = vmatpush2.msra.mxu0 0.0
        %338 = vmatprep.subr.mxu0 0.0
        %339 = vmatpush2.msra.mxu0 0.0
        %340 = vmatprep.subr.mxu0 0.0
        %341 = vmatpush2.msra.mxu0 0.0
        %342 = vmatprep.subr.mxu0 0.0
        %343 = vmatpush2.msra.mxu0 0.0
        %344 = vmatprep.subr.mxu0 0.0
        %345 = vmatpush2.msra.mxu0 0.0
        %346 = vmatprep.subr.mxu0 0.0
        %347 = vmatpush2.msra.mxu0 0.0
        %348 = vmatprep.subr.mxu0 0.0
        %349 = vmatpush2.msra.mxu0 0.0
        %350 = vmatprep.subr.mxu0 0.0
        %351 = vmatpush2.msra.mxu0 0.0
        %352 = vmatprep.subr.mxu0 0.0
        %353 = vmatpush2.msra.mxu0 0.0
        %354 = vmatprep.subr.mxu0 0.0
        %355 = vmatpush2.msra.mxu0 0.0
        %356 = vmatprep.subr.mxu0 0.0
        %357 = vmatpush2.msra.mxu0 0.0
        %358 = vmatprep.subr.mxu0 0.0
        %359 = vmatpush2.msra.mxu0 0.0
        %360 = vmatprep.subr.mxu0 0.0
        %361 = vmatpush2.msra.mxu0 0.0
        %362 = vmatprep.mubr.f32.mxu0 0.0
        %v363 = vand.u32 %v205, 4294901760
        %364 = vmatmul.mubr.f32.gmra.mxu0 %v363
        %v365 = vpop.f32.mrf.mxu0
        %v366 = vadd.f32 %v285, %v365
        %v367 = vpop.f32.mrf.mxu0
        %368 = vdwg.mxu0
        %369 = vmatprep.subr.mxu0 0.0
        %370 = vmatpush1.msra.mxu0 0.0
        %371 = vmatprep.subr.mxu0 0.0
        %372 = vmatpush1.msra.mxu0 0.0
        %373 = vmatprep.subr.mxu0 0.0
        %374 = vmatpush1.msra.mxu0 0.0
        %375 = vmatprep.subr.mxu0 0.0
        %376 = vmatpush1.msra.mxu0 0.0
        %377 = vmatprep.subr.mxu0 0.0
        %378 = vmatpush1.msra.mxu0 0.0
        %379 = vmatprep.subr.mxu0 0.0
        %380 = vmatpush1.msra.mxu0 0.0
        %381 = vmatprep.subr.mxu0 0.0
        %382 = vmatpush1.msra.mxu0 0.0
        %383 = vmatprep.subr.mxu0 0.0
        %384 = vmatpush1.msra.mxu0 0.0
        %385 = vmatprep.subr.mxu0 0.0
        %386 = vmatpush1.msra.mxu0 0.0
        %387 = vmatprep.subr.mxu0 0.0
        %388 = vmatpush1.msra.mxu0 0.0
        %389 = vmatprep.subr.mxu0 0.0
        %390 = vmatpush1.msra.mxu0 0.0
        %391 = vmatprep.subr.mxu0 0.0
        %392 = vmatpush1.msra.mxu0 0.0
        %393 = vmatprep.subr.mxu0 0.0
        %394 = vmatpush1.msra.mxu0 0.0
        %395 = vmatprep.subr.mxu0 0.0
        %396 = vmatpush1.msra.mxu0 0.0
        %397 = vmatprep.subr.mxu0 0.0
        %v398 = vand.u32 %v209, 4294901760
        %v399 = vsub.f32 %v209, %v398
        %400 = vmatpush1.msra.mxu0 %v399
        %401 = vmatprep.subr.mxu0 0.0
        %v402 = vand.u32 %v195, 4294901760
        %v403 = vsub.f32 %v195, %v402
        %404 = vmatpush1.msra.mxu0 %v403
        %405 = vmatprep.subr.mxu0 0.0
        %406 = vmatpush2.msra.mxu0 0.0
        %407 = vmatprep.subr.mxu0 0.0
        %408 = vmatpush2.msra.mxu0 0.0
        %409 = vmatprep.subr.mxu0 0.0
        %410 = vmatpush2.msra.mxu0 0.0
        %411 = vmatprep.subr.mxu0 0.0
        %412 = vmatpush2.msra.mxu0 0.0
        %413 = vmatprep.subr.mxu0 0.0
        %414 = vmatpush2.msra.mxu0 0.0
        %415 = vmatprep.subr.mxu0 0.0
        %416 = vmatpush2.msra.mxu0 0.0
        %417 = vmatprep.subr.mxu0 0.0
        %418 = vmatpush2.msra.mxu0 0.0
        %419 = vmatprep.subr.mxu0 0.0
        %420 = vmatpush2.msra.mxu0 0.0
        %421 = vmatprep.subr.mxu0 0.0
        %422 = vmatpush2.msra.mxu0 0.0
        %423 = vmatprep.subr.mxu0 0.0
        %424 = vmatpush2.msra.mxu0 0.0
        %425 = vmatprep.subr.mxu0 0.0
        %426 = vmatpush2.msra.mxu0 0.0
        %427 = vmatprep.subr.mxu0 0.0
        %428 = vmatpush2.msra.mxu0 0.0
        %429 = vmatprep.subr.mxu0 0.0
        %430 = vmatpush2.msra.mxu0 0.0
        %431 = vmatprep.subr.mxu0 0.0
        %432 = vmatpush2.msra.mxu0 0.0
        %433 = vmatprep.subr.mxu0 0.0
        %434 = vmatpush2.msra.mxu0 0.0
        %435 = vmatprep.subr.mxu0 0.0
        %436 = vmatpush2.msra.mxu0 0.0
        %437 = vmatprep.mubr.f32.mxu0 0.0
        %v438 = vand.u32 %v205, 4294901760
        %v439 = vsub.f32 %v205, %v438
        %440 = vmatmul.mubr.f32.gmra.mxu0 %v439
        %v441 = vpop.f32.mrf.mxu0
        %v442 = vadd.f32 %v366, %v441
        %v443 = vpop.f32.mrf.mxu0
        %444 = vdwg.mxu0
        %445 = vmatprep.subr.mxu0 0.0
        %446 = vmatpush1.msra.mxu0 0.0
        %447 = vmatprep.subr.mxu0 0.0
        %448 = vmatpush1.msra.mxu0 0.0
        %449 = vmatprep.subr.mxu0 0.0
        %450 = vmatpush1.msra.mxu0 0.0
        %451 = vmatprep.subr.mxu0 0.0
        %452 = vmatpush1.msra.mxu0 0.0
        %453 = vmatprep.subr.mxu0 0.0
        %454 = vmatpush1.msra.mxu0 0.0
        %455 = vmatprep.subr.mxu0 0.0
        %456 = vmatpush1.msra.mxu0 0.0
        %457 = vmatprep.subr.mxu0 0.0
        %458 = vmatpush1.msra.mxu0 0.0
        %459 = vmatprep.subr.mxu0 0.0
        %460 = vmatpush1.msra.mxu0 0.0
        %461 = vmatprep.subr.mxu0 0.0
        %462 = vmatpush1.msra.mxu0 0.0
        %463 = vmatprep.subr.mxu0 0.0
        %464 = vmatpush1.msra.mxu0 0.0
        %465 = vmatprep.subr.mxu0 0.0
        %466 = vmatpush1.msra.mxu0 0.0
        %467 = vmatprep.subr.mxu0 0.0
        %468 = vmatpush1.msra.mxu0 0.0
        %469 = vmatprep.subr.mxu0 0.0
        %470 = vmatpush1.msra.mxu0 0.0
        %471 = vmatprep.subr.mxu0 0.0
        %472 = vmatpush1.msra.mxu0 0.0
        %473 = vmatprep.subr.mxu0 0.0
        %v474 = vand.u32 %v209, 4294901760
        %475 = vmatpush1.msra.mxu0 %v474
        %476 = vmatprep.subr.mxu0 0.0
        %v477 = vand.u32 %v195, 4294901760
        %478 = vmatpush1.msra.mxu0 %v477
        %479 = vmatprep.subr.mxu0 0.0
        %480 = vmatpush2.msra.mxu0 0.0
        %481 = vmatprep.subr.mxu0 0.0
        %482 = vmatpush2.msra.mxu0 0.0
        %483 = vmatprep.subr.mxu0 0.0
        %484 = vmatpush2.msra.mxu0 0.0
        %485 = vmatprep.subr.mxu0 0.0
        %486 = vmatpush2.msra.mxu0 0.0
        %487 = vmatprep.subr.mxu0 0.0
        %488 = vmatpush2.msra.mxu0 0.0
        %489 = vmatprep.subr.mxu0 0.0
        %490 = vmatpush2.msra.mxu0 0.0
        %491 = vmatprep.subr.mxu0 0.0
        %492 = vmatpush2.msra.mxu0 0.0
        %493 = vmatprep.subr.mxu0 0.0
        %494 = vmatpush2.msra.mxu0 0.0
        %495 = vmatprep.subr.mxu0 0.0
        %496 = vmatpush2.msra.mxu0 0.0
        %497 = vmatprep.subr.mxu0 0.0
        %498 = vmatpush2.msra.mxu0 0.0
        %499 = vmatprep.subr.mxu0 0.0
        %500 = vmatpush2.msra.mxu0 0.0
        %501 = vmatprep.subr.mxu0 0.0
        %502 = vmatpush2.msra.mxu0 0.0
        %503 = vmatprep.subr.mxu0 0.0
        %504 = vmatpush2.msra.mxu0 0.0
        %505 = vmatprep.subr.mxu0 0.0
        %506 = vmatpush2.msra.mxu0 0.0
        %507 = vmatprep.subr.mxu0 0.0
        %508 = vmatpush2.msra.mxu0 0.0
        %509 = vmatprep.subr.mxu0 0.0
        %510 = vmatpush2.msra.mxu0 0.0
        %511 = vmatprep.mubr.f32.mxu0 0.0
        %v512 = vand.u32 %v205, 4294901760
        %v513 = vsub.f32 %v205, %v512
        %v514 = vand.u32 %v513, 4294901760
        %515 = vmatmul.mubr.f32.gmra.mxu0 %v514
        %v516 = vpop.f32.mrf.mxu0
        %v517 = vadd.f32 %v442, %v516
        %v518 = vpop.f32.mrf.mxu0
        %519 = vdwg.mxu0
        %520 = vmatprep.subr.mxu0 0.0
        %521 = vmatpush1.msra.mxu0 0.0
        %522 = vmatprep.subr.mxu0 0.0
        %523 = vmatpush1.msra.mxu0 0.0
        %524 = vmatprep.subr.mxu0 0.0
        %525 = vmatpush1.msra.mxu0 0.0
        %526 = vmatprep.subr.mxu0 0.0
        %527 = vmatpush1.msra.mxu0 0.0
        %528 = vmatprep.subr.mxu0 0.0
        %529 = vmatpush1.msra.mxu0 0.0
        %530 = vmatprep.subr.mxu0 0.0
        %531 = vmatpush1.msra.mxu0 0.0
        %532 = vmatprep.subr.mxu0 0.0
        %533 = vmatpush1.msra.mxu0 0.0
        %534 = vmatprep.subr.mxu0 0.0
        %535 = vmatpush1.msra.mxu0 0.0
        %536 = vmatprep.subr.mxu0 0.0
        %537 = vmatpush1.msra.mxu0 0.0
        %538 = vmatprep.subr.mxu0 0.0
        %539 = vmatpush1.msra.mxu0 0.0
        %540 = vmatprep.subr.mxu0 0.0
        %541 = vmatpush1.msra.mxu0 0.0
        %542 = vmatprep.subr.mxu0 0.0
        %543 = vmatpush1.msra.mxu0 0.0
        %544 = vmatprep.subr.mxu0 0.0
        %545 = vmatpush1.msra.mxu0 0.0
        %546 = vmatprep.subr.mxu0 0.0
        %547 = vmatpush1.msra.mxu0 0.0
        %548 = vmatprep.subr.mxu0 0.0
        %v549 = vand.u32 %v209, 4294901760
        %v550 = vsub.f32 %v209, %v549
        %v551 = vand.u32 %v550, 4294901760
        %552 = vmatpush1.msra.mxu0 %v551
        %553 = vmatprep.subr.mxu0 0.0
        %v554 = vand.u32 %v195, 4294901760
        %v555 = vsub.f32 %v195, %v554
        %v556 = vand.u32 %v555, 4294901760
        %557 = vmatpush1.msra.mxu0 %v556
        %558 = vmatprep.subr.mxu0 0.0
        %559 = vmatpush2.msra.mxu0 0.0
        %560 = vmatprep.subr.mxu0 0.0
        %561 = vmatpush2.msra.mxu0 0.0
        %562 = vmatprep.subr.mxu0 0.0
        %563 = vmatpush2.msra.mxu0 0.0
        %564 = vmatprep.subr.mxu0 0.0
        %565 = vmatpush2.msra.mxu0 0.0
        %566 = vmatprep.subr.mxu0 0.0
        %567 = vmatpush2.msra.mxu0 0.0
        %568 = vmatprep.subr.mxu0 0.0
        %569 = vmatpush2.msra.mxu0 0.0
        %570 = vmatprep.subr.mxu0 0.0
        %571 = vmatpush2.msra.mxu0 0.0
        %572 = vmatprep.subr.mxu0 0.0
        %573 = vmatpush2.msra.mxu0 0.0
        %574 = vmatprep.subr.mxu0 0.0
        %575 = vmatpush2.msra.mxu0 0.0
        %576 = vmatprep.subr.mxu0 0.0
        %577 = vmatpush2.msra.mxu0 0.0
        %578 = vmatprep.subr.mxu0 0.0
        %579 = vmatpush2.msra.mxu0 0.0
        %580 = vmatprep.subr.mxu0 0.0
        %581 = vmatpush2.msra.mxu0 0.0
        %582 = vmatprep.subr.mxu0 0.0
        %583 = vmatpush2.msra.mxu0 0.0
        %584 = vmatprep.subr.mxu0 0.0
        %585 = vmatpush2.msra.mxu0 0.0
        %586 = vmatprep.subr.mxu0 0.0
        %587 = vmatpush2.msra.mxu0 0.0
        %588 = vmatprep.subr.mxu0 0.0
        %589 = vmatpush2.msra.mxu0 0.0
        %590 = vmatprep.mubr.f32.mxu0 0.0
        %v591 = vand.u32 %v205, 4294901760
        %592 = vmatmul.mubr.f32.gmra.mxu0 %v591
        %v593 = vpop.f32.mrf.mxu0
        %v594 = vadd.f32 %v517, %v593
        %v595 = vpop.f32.mrf.mxu0
        %596 = vdwg.mxu0
        %597 = vmatprep.subr.mxu0 0.0
        %598 = vmatpush1.msra.mxu0 0.0
        %599 = vmatprep.subr.mxu0 0.0
        %600 = vmatpush1.msra.mxu0 0.0
        %601 = vmatprep.subr.mxu0 0.0
        %602 = vmatpush1.msra.mxu0 0.0
        %603 = vmatprep.subr.mxu0 0.0
        %604 = vmatpush1.msra.mxu0 0.0
        %605 = vmatprep.subr.mxu0 0.0
        %606 = vmatpush1.msra.mxu0 0.0
        %607 = vmatprep.subr.mxu0 0.0
        %608 = vmatpush1.msra.mxu0 0.0
        %609 = vmatprep.subr.mxu0 0.0
        %610 = vmatpush1.msra.mxu0 0.0
        %611 = vmatprep.subr.mxu0 0.0
        %612 = vmatpush1.msra.mxu0 0.0
        %613 = vmatprep.subr.mxu0 0.0
        %614 = vmatpush1.msra.mxu0 0.0
        %615 = vmatprep.subr.mxu0 0.0
        %616 = vmatpush1.msra.mxu0 0.0
        %617 = vmatprep.subr.mxu0 0.0
        %618 = vmatpush1.msra.mxu0 0.0
        %619 = vmatprep.subr.mxu0 0.0
        %620 = vmatpush1.msra.mxu0 0.0
        %621 = vmatprep.subr.mxu0 0.0
        %622 = vmatpush1.msra.mxu0 0.0
        %623 = vmatprep.subr.mxu0 0.0
        %624 = vmatpush1.msra.mxu0 0.0
        %625 = vmatprep.subr.mxu0 0.0
        %v626 = vand.u32 %v209, 4294901760
        %627 = vmatpush1.msra.mxu0 %v626
        %628 = vmatprep.subr.mxu0 0.0
        %v629 = vand.u32 %v195, 4294901760
        %630 = vmatpush1.msra.mxu0 %v629
        %631 = vmatprep.subr.mxu0 0.0
        %632 = vmatpush2.msra.mxu0 0.0
        %633 = vmatprep.subr.mxu0 0.0
        %634 = vmatpush2.msra.mxu0 0.0
        %635 = vmatprep.subr.mxu0 0.0
        %636 = vmatpush2.msra.mxu0 0.0
        %637 = vmatprep.subr.mxu0 0.0
        %638 = vmatpush2.msra.mxu0 0.0
        %639 = vmatprep.subr.mxu0 0.0
        %640 = vmatpush2.msra.mxu0 0.0
        %641 = vmatprep.subr.mxu0 0.0
        %642 = vmatpush2.msra.mxu0 0.0
        %643 = vmatprep.subr.mxu0 0.0
        %644 = vmatpush2.msra.mxu0 0.0
        %645 = vmatprep.subr.mxu0 0.0
        %646 = vmatpush2.msra.mxu0 0.0
        %647 = vmatprep.subr.mxu0 0.0
        %648 = vmatpush2.msra.mxu0 0.0
        %649 = vmatprep.subr.mxu0 0.0
        %650 = vmatpush2.msra.mxu0 0.0
        %651 = vmatprep.subr.mxu0 0.0
        %652 = vmatpush2.msra.mxu0 0.0
        %653 = vmatprep.subr.mxu0 0.0
        %654 = vmatpush2.msra.mxu0 0.0
        %655 = vmatprep.subr.mxu0 0.0
        %656 = vmatpush2.msra.mxu0 0.0
        %657 = vmatprep.subr.mxu0 0.0
        %658 = vmatpush2.msra.mxu0 0.0
        %659 = vmatprep.subr.mxu0 0.0
        %660 = vmatpush2.msra.mxu0 0.0
        %661 = vmatprep.subr.mxu0 0.0
        %662 = vmatpush2.msra.mxu0 0.0
        %663 = vmatprep.mubr.f32.mxu0 0.0
        %v664 = vand.u32 %v205, 4294901760
        %665 = vmatmul.mubr.f32.gmra.mxu0 %v664
        %v666 = vpop.f32.mrf.mxu0
        %v667 = vadd.f32 %v594, %v666
        %v668 = vpop.f32.mrf.mxu0
        %669 = vdwg.mxu0
        %vm670 = vcmask 64512
        %671 = vst.msk [vmem:[%s185] sm:$0xff] %vm670, %v667
        %s672 = sand.u32 %s109, 1
        %s673 = scalar_lea.sflag [#allocation3], %s672
        %s674 = sand.u32 %s109, 1
        %s675 = smul.addr %s674, 8
        %s676 = scalar_lea.vmem [#allocation2], %s675
        // Predicated region
        $region33: #{tpu_custom_call.1} parent=31 // pred_check
          %p677 = pneg %p119
        $region34: #{tpu_custom_call.1} parent=31 // pred_check_branch
          %679 = sbr.rel (%p677) target = $region36
        $region35: #{tpu_custom_call.1} parent=31 // pred_region
          %s681 = ssub.s32 128, 128
          %682 = vsyncadd %s673, %s681
          %s683 = sadd.s32 %s22, %s21
          %s684 = smul.addr %s683, 128
          %s685 = scalar_lea.hbm %s3, %s684
          %s687 = sshll.u32 %s676, 4
          %s688 = int_to_ptr.vmem [resolvable:$true] %s687
          %690 = dma.vmem_to_hbm [thread:$0]  %s688, 128, %s685, %s673
        $region36: #{tpu_custom_call.1} parent=31 // pred_fallthru
          _
      $region32: #{tpu_custom_call.1} parent=5 // pred_fallthru
        _
      %p691 = scmp.le.s32.totalorder 2, %s12
      // Predicated region
      $region37: #{tpu_custom_call.1} parent=5 // pred_check
        %p692 = pneg %p691
      $region38: #{tpu_custom_call.1} parent=5 // pred_check_branch
        %694 = sbr.rel (%p692) target = $region40
      $region39: #{tpu_custom_call.1} parent=5 // pred_region
        %s695 = ssub.s32 %s12, 2
        // Predicated region
        $region41: #{tpu_custom_call.1} parent=39 // pred_check
          %p696 = pneg %p125
        $region42: #{tpu_custom_call.1} parent=39 // pred_check_branch
          %698 = sbr.rel (%p696) target = $region44
        $region43: #{tpu_custom_call.1} parent=39 // pred_region
          %s699 = sand.u32 %s110, 1
          %s700 = scalar_lea.sflag [#allocation3], %s699
          %s701 = sand.u32 %s110, 1
          %s702 = smul.addr %s701, 8
          %s703 = scalar_lea.vmem [#allocation2], %s702
          %704 = dma.done %s700, 128
        $region44: #{tpu_custom_call.1} parent=39 // pred_fallthru
          _
      $region40: #{tpu_custom_call.1} parent=5 // pred_fallthru
        _
    $region6: #{tpu_custom_call.1} parent=1 // loop_footer
      %s16 = sadd.s32 1, %s12
    $region7: #{tpu_custom_call.1} parent=1 // loop_footer_branch
      %11 = sbr.rel target = $region3
    $region8: #{tpu_custom_call.1} parent=1 // loop_exit
      _
    %705 = vsyncpa [#allocation3], 1
    %s706 = scalar_lea.sflag [#allocation3], 1
    %707 = vsyncpa %s706, 1

</llo_original>
